<compile_context>
chip_gen: v5e
topology: v5e:2x2
jax: 0.10.0
libtpu: 0.0.40
codegen_flags: <defaults>
</compile_context>

<pallas_src>
import functools

import jax
import jax.numpy as jnp
from jax import lax
from jax.experimental import pallas as pl
from jax.experimental.pallas import tpu as pltpu

NEG_SLOPE = 0.01  # PyTorch nn.LeakyReLU default


def _leaky(v):
    return jnp.where(v > 0, v, NEG_SLOPE * v)


def _default_l1_postop_dtype():
    """bf16 element-wise post-ops are native on v6e/v7x VALUs; keep f32 on
    chips without a bf16 VPU (v5e and earlier)."""
    try:
        kind = jax.devices()[0].device_kind.lower()
    except Exception:
        return jnp.float32
    if any(old in kind for old in ("v2", "v3", "v4", "v5")):
        return jnp.float32
    return jnp.bfloat16


def _mlp_kernel(x_ref, w1_ref, b1_ref, w2_ref, b2_ref, w3_ref, b3_ref, ot_ref):
    # x arrives in its natural (TB, D_in) layout straight from HBM (f32).
    # Cast to the matmul dtype in-register (cheaper than an extra HBM pass).
    x = x_ref[...].astype(w1_ref.dtype)

    # Layer 1: contract on x's last dim -> (N1, TB); batch lands on the lane
    # axis so the rest of the network (and the output store) is lane-dense.
    h1 = lax.dot_general(w1_ref[...], x, (((1,), (1,)), ((), ())),
                         preferred_element_type=jnp.float32)
    # bias + LeakyReLU in bf16 on v6e/v7x (b1_ref dtype), f32 on v5e.
    h1 = _leaky(h1.astype(b1_ref.dtype) + b1_ref[...])

    # Layer 2: MXU matmul, f32 accumulate; bias + LeakyReLU in f32.
    h2 = jnp.dot(w2_ref[...], h1.astype(w2_ref.dtype),
                 preferred_element_type=jnp.float32)
    h2 = _leaky(h2 + b2_ref[...])

    # Layer 3 (output width 1): VPU multiply + XLU sublane reduce keeps the MXU
    # free and yields a lane-dense (1, TB) row.  b3 is an SMEM scalar.
    out_row = jnp.sum(h2 * w3_ref[...], axis=0, keepdims=True) + b3_ref[0, 0]
    ot_ref[...] = out_row.astype(ot_ref.dtype)


@functools.partial(jax.jit,
                   static_argnames=("batch_tile", "compute_dtype",
                                    "l1_postop_dtype"))
def neural_network_forward(x, w1, b1, w2, b2, w3, b3, *, batch_tile=2048,
                           compute_dtype=jnp.bfloat16, l1_postop_dtype=None):
    """Fused 3-layer MLP forward pass as a single batch-tiled Pallas TPU kernel.

    Parameters use the PyTorch nn.Linear layout:
      x:  (B, D_in) f32
      w1: (N1, D_in)  b1: (N1,)
      w2: (N2, N1)    b2: (N2,)
      w3: (1,  N2)    b3: (1,)
    Returns (B, 1) f32.
    """
    B, d_in = x.shape
    n1 = w1.shape[0]
    n2 = w2.shape[0]
    if l1_postop_dtype is None:
        l1_postop_dtype = _default_l1_postop_dtype()

    # --- batch tile selection ------------------------------------------------
    # Force a multiple of 256 (keeps stores lane-dense / unmasked and fills the
    # MXU), large enough to amortise the ~0.35 us per-grid-step cost, but capped
    # so the grid has >= 2 steps when the batch allows it (so the "parallel"
    # axis can shard across both TensorCores on v7x).
    tb = max(256, 256 * (batch_tile // 256))
    tb = min(tb, 256 * pl.cdiv(B, 256))        # no point tiling past the batch
    if B > 256:
        tb = min(tb, 256 * pl.cdiv(B, 512))    # guarantee num_tiles >= 2
    num_tiles = pl.cdiv(B, tb)
    b_pad = num_tiles * tb

    # x is consumed in its natural layout; only zero-pad the batch when it does
    # not divide the tile (no transpose / dtype copy through HBM).
    x_in = x if b_pad == B else jnp.pad(x, ((0, b_pad - B), (0, 0)))

    w1c = w1.astype(compute_dtype)                    # (N1, D_in), VMEM-resident
    w2c = w2.astype(compute_dtype)                    # (N2, N1)
    b1c = b1.reshape(n1, 1).astype(l1_postop_dtype)   # broadcast over lanes
    b2c = b2.reshape(n2, 1).astype(jnp.float32)
    w3c = w3.reshape(1, n2).T.astype(jnp.float32)     # (N2, 1) — VPU layer 3
    b3c = b3.reshape(1, 1).astype(jnp.float32)        # SMEM scalar

    const = lambda shape: pl.BlockSpec(shape, lambda i: (0, 0))

    w_itemsize = jnp.finfo(compute_dtype).bits // 8
    cost = pl.CostEstimate(
        flops=2 * b_pad * (n1 * d_in + n2 * n1 + n2),
        transcendentals=0,
        bytes_accessed=(b_pad * d_in * 4                       # x stream (f32)
                        + b_pad * 4                            # output row (f32)
                        + (n1 * d_in + n2 * n1) * w_itemsize   # weights
                        + (n1 + n2 + n2 + 1) * 4))             # biases + w3

    out = pl.pallas_call(
        _mlp_kernel,
        out_shape=jax.ShapeDtypeStruct((1, b_pad), jnp.float32),
        grid=(num_tiles,),
        in_specs=[
            pl.BlockSpec((tb, d_in), lambda i: (i, 0)),          # x batch tile
            const((n1, d_in)),                                   # resident weights
            const((n1, 1)),
            const((n2, n1)),
            const((n2, 1)),
            const((n2, 1)),
            pl.BlockSpec(memory_space=pltpu.MemorySpace.SMEM),   # b3 scalar
        ],
        out_specs=pl.BlockSpec((1, tb), lambda i: (0, i)),       # lane-dense out
        compiler_params=pltpu.CompilerParams(
            dimension_semantics=("parallel",)),                  # megacore on v7x
        cost_estimate=cost,
    )(x_in, w1c, b1c, w2c, b2c, w3c, b3c)

    return out[0, :B].reshape(B, 1)


def _init_linear(key, fan_in, fan_out):
    """Deterministic init matching nn.Linear's U(-1/sqrt(fan_in), 1/sqrt(fan_in)).
    Weight returned in PyTorch layout (fan_out, fan_in)."""
    kw, kb = jax.random.split(key)
    bound = 1.0 / jnp.sqrt(jnp.float32(fan_in))
    w = jax.random.uniform(kw, (fan_out, fan_in), jnp.float32, -bound, bound)
    b = jax.random.uniform(kb, (fan_out,), jnp.float32, -bound, bound)
    return w, b


if __name__ == "__main__":
    # Small shapes consistent with the module:
    # input_vars=32, params = {'n_unit_l1': 64, 'n_unit_l2': 32}, batch=8
    input_vars, n1, n2, batch = 32, 64, 32, 8

    key = jax.random.PRNGKey(0)
    k_x, k_l1, k_l2, k_l3 = jax.random.split(key, 4)

    x = jax.random.normal(k_x, (batch, input_vars), jnp.float32)
    w1, b1 = _init_linear(k_l1, input_vars, n1)
    w2, b2 = _init_linear(k_l2, n1, n2)
    w3, b3 = _init_linear(k_l3, n2, 1)

    pd = _default_l1_postop_dtype()
    out = neural_network_forward(x, w1, b1, w2, b2, w3, b3, l1_postop_dtype=pd)
    out = jax.block_until_ready(out)

    # Pure-JAX reference with the same precision choices as the kernel
    # (bf16 matmul operands, f32 accumulate, layer-1 post-ops in `pd`,
    #  layer-2/3 post-ops in f32, exact elementwise layer 3).
    cd = jnp.bfloat16
    h = jnp.dot(x.astype(cd), w1.T.astype(cd), preferred_element_type=jnp.float32)
    h = _leaky(h.astype(pd) + b1.astype(pd)).astype(jnp.float32)
    h = jnp.dot(h.astype(cd), w2.T.astype(cd),
                preferred_element_type=jnp.float32) + b2
    h = _leaky(h)
    ref = jnp.sum(h * w3.reshape(1, n2), axis=1, keepdims=True) + b3

    assert out.shape == (batch, 1)
    assert bool(jnp.all(jnp.isfinite(out)))
    assert jnp.allclose(out, ref, atol=2e-3, rtol=2e-3), \
        f"max abs err {jnp.max(jnp.abs(out - ref))}"
    print("KERNEL_OK")
</pallas_src>

<mosaic_0001>
module attributes {stable_mosaic.version = 11 : i64} {
  func.func @_mlp_kernel(%arg0: i32, %arg1: memref<256x32xf32, #tpu.memory_space<vmem>>, %arg2: memref<64x32xbf16, #tpu.memory_space<vmem>>, %arg3: memref<64x1xbf16, #tpu.memory_space<vmem>>, %arg4: memref<32x64xbf16, #tpu.memory_space<vmem>>, %arg5: memref<32x1xf32, #tpu.memory_space<vmem>>, %arg6: memref<32x1xf32, #tpu.memory_space<vmem>>, %arg7: memref<1x1xf32, #tpu.memory_space<smem>>, %arg8: memref<1x256xf32, #tpu.memory_space<vmem>>) attributes {dimension_semantics = [#tpu.dimension_semantics<parallel>], iteration_bounds = array<i64: 1>, scalar_prefetch = 0 : i64, scratch_operands = 0 : i64, tpu.core_type = #tpu.core_type<tc>, window_params = [{transform_indices = @transform_0, window_bounds = array<i64: 256, 32>}, {pipeline_mode = #tpu.pipeline_mode<synchronous>, transform_indices = @transform_1, window_bounds = array<i64: 64, 32>}, {pipeline_mode = #tpu.pipeline_mode<synchronous>, transform_indices = @transform_2, window_bounds = array<i64: 64, 1>}, {pipeline_mode = #tpu.pipeline_mode<synchronous>, transform_indices = @transform_3, window_bounds = array<i64: 32, 64>}, {pipeline_mode = #tpu.pipeline_mode<synchronous>, transform_indices = @transform_4, window_bounds = array<i64: 32, 1>}, {pipeline_mode = #tpu.pipeline_mode<synchronous>, transform_indices = @transform_5, window_bounds = array<i64: 32, 1>}, {transform_indices = @transform_6, window_bounds = array<i64: 1, 1>}, {transform_indices = @transform_7, window_bounds = array<i64: 1, 256>}]} {
    %c0 = arith.constant 0 : index
    %c0_0 = arith.constant 0 : index
    %0 = vector.load %arg1[%c0, %c0_0] : memref<256x32xf32, #tpu.memory_space<vmem>>, vector<256x32xf32>
    %1 = arith.truncf %0 : vector<256x32xf32> to vector<256x32xbf16>
    %c0_1 = arith.constant 0 : index
    %c0_2 = arith.constant 0 : index
    %2 = vector.load %arg2[%c0_1, %c0_2] : memref<64x32xbf16, #tpu.memory_space<vmem>>, vector<64x32xbf16>
    %cst = arith.constant dense<0.000000e+00> : vector<64x256xf32>
    %3 = tpu.matmul %2, %1, %cst {dimension_numbers = #tpu.dot_dimension_numbers<[1], [1], [0], [0], [0, 0, 1, 0], [], []>} : vector<64x32xbf16>, vector<256x32xbf16>, vector<64x256xf32> -> vector<64x256xf32>
    %4 = arith.truncf %3 : vector<64x256xf32> to vector<64x256xbf16>
    %c0_3 = arith.constant 0 : index
    %c0_4 = arith.constant 0 : index
    %5 = vector.load %arg3[%c0_3, %c0_4] : memref<64x1xbf16, #tpu.memory_space<vmem>>, vector<64x1xbf16>
    %6 = vector.broadcast %5 : vector<64x1xbf16> to vector<64x256xbf16>
    %7 = arith.addf %4, %6 : vector<64x256xbf16>
    %cst_5 = arith.constant 0.000000e+00 : bf16
    %8 = vector.broadcast %cst_5 : bf16 to vector<64x256xbf16>
    %9 = arith.cmpf ogt, %7, %8 : vector<64x256xbf16>
    %cst_6 = arith.constant 1.000980e-02 : bf16
    %10 = vector.broadcast %cst_6 : bf16 to vector<64x256xbf16>
    %11 = arith.mulf %10, %7 : vector<64x256xbf16>
    %12 = arith.select %9, %7, %11 : vector<64x256xi1>, vector<64x256xbf16>
    %c0_7 = arith.constant 0 : index
    %c0_8 = arith.constant 0 : index
    %13 = vector.load %arg4[%c0_7, %c0_8] : memref<32x64xbf16, #tpu.memory_space<vmem>>, vector<32x64xbf16>
    %cst_9 = arith.constant dense<0.000000e+00> : vector<32x256xf32>
    %14 = tpu.matmul %13, %12, %cst_9 {dimension_numbers = #tpu.dot_dimension_numbers<[1], [0], [0], [1], [0, 0, 1, 1], [], []>} : vector<32x64xbf16>, vector<64x256xbf16>, vector<32x256xf32> -> vector<32x256xf32>
    %c0_10 = arith.constant 0 : index
    %c0_11 = arith.constant 0 : index
    %15 = vector.load %arg5[%c0_10, %c0_11] : memref<32x1xf32, #tpu.memory_space<vmem>>, vector<32x1xf32>
    %16 = vector.broadcast %15 : vector<32x1xf32> to vector<32x256xf32>
    %17 = arith.addf %14, %16 : vector<32x256xf32>
    %cst_12 = arith.constant 0.000000e+00 : f32
    %18 = vector.broadcast %cst_12 : f32 to vector<32x256xf32>
    %19 = arith.cmpf ogt, %17, %18 : vector<32x256xf32>
    %cst_13 = arith.constant 0.00999999977 : f32
    %20 = vector.broadcast %cst_13 : f32 to vector<32x256xf32>
    %21 = arith.mulf %20, %17 : vector<32x256xf32>
    %22 = arith.select %19, %17, %21 : vector<32x256xi1>, vector<32x256xf32>
    %c0_14 = arith.constant 0 : index
    %c0_15 = arith.constant 0 : index
    %23 = vector.load %arg6[%c0_14, %c0_15] : memref<32x1xf32, #tpu.memory_space<vmem>>, vector<32x1xf32>
    %24 = vector.broadcast %23 : vector<32x1xf32> to vector<32x256xf32>
    %25 = arith.mulf %22, %24 : vector<32x256xf32>
    %cst_16 = arith.constant dense<0.000000e+00> : vector<256xf32>
    %26 = vector.multi_reduction <add>, %25, %cst_16 [0] : vector<32x256xf32> to vector<256xf32>
    %27 = vector.shape_cast %26 : vector<256xf32> to vector<1x256xf32>
    %c0_17 = arith.constant 0 : index
    %c0_18 = arith.constant 0 : index
    %28 = memref.load %arg7[%c0_17, %c0_18] : memref<1x1xf32, #tpu.memory_space<smem>>
    %29 = vector.broadcast %28 : f32 to vector<1x256xf32>
    %30 = arith.addf %27, %29 : vector<1x256xf32>
    %c0_19 = arith.constant 0 : index
    %c0_20 = arith.constant 0 : index
    %31 = vector.load %arg8[%c0_19, %c0_20] : memref<1x256xf32, #tpu.memory_space<vmem>>, vector<1x256xf32>
    tpu.vector_store %arg8[%c0_19, %c0_20], %30 {strides = array<i32>} : memref<1x256xf32, #tpu.memory_space<vmem>>, vector<1x256xf32>,
    return
  }
  func.func @transform_0(%arg0: i32) -> (i32, i32) {
    %c0_i32 = arith.constant 0 : i32
    %c0_i32_0 = arith.constant 0 : i32
    return %arg0, %c0_i32 : i32, i32
  }
  func.func @transform_1(%arg0: i32) -> (i32, i32) {
    %c0_i32 = arith.constant 0 : i32
    %c0_i32_0 = arith.constant 0 : i32
    %c0_i32_1 = arith.constant 0 : i32
    return %c0_i32, %c0_i32_0 : i32, i32
  }
  func.func @transform_2(%arg0: i32) -> (i32, i32) {
    %c0_i32 = arith.constant 0 : i32
    %c0_i32_0 = arith.constant 0 : i32
    %c0_i32_1 = arith.constant 0 : i32
    return %c0_i32, %c0_i32_0 : i32, i32
  }
  func.func @transform_3(%arg0: i32) -> (i32, i32) {
    %c0_i32 = arith.constant 0 : i32
    %c0_i32_0 = arith.constant 0 : i32
    %c0_i32_1 = arith.constant 0 : i32
    return %c0_i32, %c0_i32_0 : i32, i32
  }
  func.func @transform_4(%arg0: i32) -> (i32, i32) {
    %c0_i32 = arith.constant 0 : i32
    %c0_i32_0 = arith.constant 0 : i32
    %c0_i32_1 = arith.constant 0 : i32
    return %c0_i32, %c0_i32_0 : i32, i32
  }
  func.func @transform_5(%arg0: i32) -> (i32, i32) {
    %c0_i32 = arith.constant 0 : i32
    %c0_i32_0 = arith.constant 0 : i32
    %c0_i32_1 = arith.constant 0 : i32
    return %c0_i32, %c0_i32_0 : i32, i32
  }
  func.func @transform_6(%arg0: i32) -> (i32, i32) {
    %c0_i32 = arith.constant 0 : i32
    %c0_i32_0 = arith.constant 0 : i32
    %c0_i32_1 = arith.constant 0 : i32
    return %c0_i32, %c0_i32_0 : i32, i32
  }
  func.func @transform_7(%arg0: i32) -> (i32, i32) {
    %c0_i32 = arith.constant 0 : i32
    %c0_i32_0 = arith.constant 0 : i32
    return %c0_i32, %arg0 : i32, i32
  }
}

</mosaic_0001>

<llo_original>
// kernel: neural_network_forward.1
$region0: #{neural_network_forward.1}
  #allocation0 [shape = 'u32[]', space=smem, size = 0x4, offset = 0x4, fixed_abs, tag = 'smem constant byte address 0x4 - core index']
  #allocation1 [shape = 'u32[72,128]{1,0:T(1,128)}', space=vmem, size = 0x9000, scoped, tag = 'internal scratch']
  #allocation2 [shape = 'f32[1,1]{1,0:T(1,128)S(6)}', space=smem, size = 0x200, scoped, tag = 'scoped memory for neural_network_forward.1']
  %s0 = inlined_call_operand.vmem [shape: f32[256,32], index: 0, kind: input, shape index: {}]
  %s1 = inlined_call_operand.vmem [shape: bf16[64,32], index: 1, kind: input, shape index: {}]
  %s2 = inlined_call_operand.vmem [shape: bf16[64,1], index: 2, kind: input, shape index: {}]
  %s3 = inlined_call_operand.vmem [shape: bf16[32,64], index: 3, kind: input, shape index: {}]
  %s4 = inlined_call_operand.vmem [shape: f32[32,1], index: 4, kind: input, shape index: {}]
  %s5 = inlined_call_operand.vmem [shape: f32[32,1], index: 5, kind: input, shape index: {}]
  %s6 = inlined_call_operand.<no memory space> [shape: f32[1,1], index: 6, kind: input, shape index: {}]
  %s7 = inlined_call_operand.vmem [shape: f32[1,256], index: 7, kind: output, shape index: {}]
  %s8 = sld [smem:[#allocation0]]
  $region38: #{neural_network_forward.1} parent=0
    _
  %s10 = ssub.s32 1, %s8
  %s11 = scalar_select 0, %s10, %s8
  %12 = sst [smem:[#allocation2]] %s6
  // Predicated region
  $region2: #{neural_network_forward.1} parent=0 // pred_check
    _
  $region3: #{neural_network_forward.1} parent=0 // pred_check_branch
    %14 = sbr.rel (0) target = $region5
  $region4: #{neural_network_forward.1} parent=0 // pred_region
    _
  $region5: #{neural_network_forward.1} parent=0 // pred_fallthru
    _
  // Predicated region
  $region6: #{neural_network_forward.1} parent=0 // pred_check
    _
  $region7: #{neural_network_forward.1} parent=0 // pred_check_branch
    %16 = sbr.rel (0) target = $region9
  $region8: #{neural_network_forward.1} parent=0 // pred_region
    _
  $region9: #{neural_network_forward.1} parent=0 // pred_fallthru
    _
  // Predicated region
  $region10: #{neural_network_forward.1} parent=0 // pred_check
    _
  $region11: #{neural_network_forward.1} parent=0 // pred_check_branch
    %18 = sbr.rel (0) target = $region13
  $region12: #{neural_network_forward.1} parent=0 // pred_region
    _
  $region13: #{neural_network_forward.1} parent=0 // pred_fallthru
    _
  // Predicated region
  $region14: #{neural_network_forward.1} parent=0 // pred_check
    _
  $region15: #{neural_network_forward.1} parent=0 // pred_check_branch
    %20 = sbr.rel (0) target = $region17
  $region16: #{neural_network_forward.1} parent=0 // pred_region
    _
  $region17: #{neural_network_forward.1} parent=0 // pred_fallthru
    _
  // Predicated region
  $region18: #{neural_network_forward.1} parent=0 // pred_check
    _
  $region19: #{neural_network_forward.1} parent=0 // pred_check_branch
    %22 = sbr.rel (0) target = $region21
  $region20: #{neural_network_forward.1} parent=0 // pred_region
    _
  $region21: #{neural_network_forward.1} parent=0 // pred_fallthru
    _
  // Predicated region
  $region22: #{neural_network_forward.1} parent=0 // pred_check
    _
  $region23: #{neural_network_forward.1} parent=0 // pred_check_branch
    %24 = sbr.rel (0) target = $region25
  $region24: #{neural_network_forward.1} parent=0 // pred_region
    _
  $region25: #{neural_network_forward.1} parent=0 // pred_fallthru
    _
  // Predicated region
  $region26: #{neural_network_forward.1} parent=0 // pred_check
    _
  $region27: #{neural_network_forward.1} parent=0 // pred_check_branch
    %26 = sbr.rel (0) target = $region29
  $region28: #{neural_network_forward.1} parent=0 // pred_region
    _
  $region29: #{neural_network_forward.1} parent=0 // pred_fallthru
    _
  %v28 = vld [vmem:[%s0] sm:$0xff]
  %v29 = vld [vmem:[%s0 + $0x8] sm:$0xff]
  %v30 = vld [vmem:[%s0 + $0x10] sm:$0xff]
  %v31 = vld [vmem:[%s0 + $0x18] sm:$0xff]
  %v32 = vld [vmem:[%s0 + $0x20] sm:$0xff]
  %v33 = vld [vmem:[%s0 + $0x28] sm:$0xff]
  %v34 = vld [vmem:[%s0 + $0x30] sm:$0xff]
  %v35 = vld [vmem:[%s0 + $0x38] sm:$0xff]
  %v36 = vld [vmem:[%s0 + $0x40] sm:$0xff]
  %v37 = vld [vmem:[%s0 + $0x48] sm:$0xff]
  %v38 = vld [vmem:[%s0 + $0x50] sm:$0xff]
  %v39 = vld [vmem:[%s0 + $0x58] sm:$0xff]
  %v40 = vld [vmem:[%s0 + $0x60] sm:$0xff]
  %v41 = vld [vmem:[%s0 + $0x68] sm:$0xff]
  %v42 = vld [vmem:[%s0 + $0x70] sm:$0xff]
  %v43 = vld [vmem:[%s0 + $0x78] sm:$0xff]
  %v44 = vld [vmem:[%s0 + $0x80] sm:$0xff]
  %v45 = vld [vmem:[%s0 + $0x88] sm:$0xff]
  %v46 = vld [vmem:[%s0 + $0x90] sm:$0xff]
  %v47 = vld [vmem:[%s0 + $0x98] sm:$0xff]
  %v48 = vld [vmem:[%s0 + $0xa0] sm:$0xff]
  %v49 = vld [vmem:[%s0 + $0xa8] sm:$0xff]
  %v50 = vld [vmem:[%s0 + $0xb0] sm:$0xff]
  %v51 = vld [vmem:[%s0 + $0xb8] sm:$0xff]
  %v52 = vld [vmem:[%s0 + $0xc0] sm:$0xff]
  %v53 = vld [vmem:[%s0 + $0xc8] sm:$0xff]
  %v54 = vld [vmem:[%s0 + $0xd0] sm:$0xff]
  %v55 = vld [vmem:[%s0 + $0xd8] sm:$0xff]
  %v56 = vld [vmem:[%s0 + $0xe0] sm:$0xff]
  %v57 = vld [vmem:[%s0 + $0xe8] sm:$0xff]
  %v58 = vld [vmem:[%s0 + $0xf0] sm:$0xff]
  %v59 = vld [vmem:[%s0 + $0xf8] sm:$0xff]
  %v60 = vpack.c.bf16 %v29, %v28
  %v61 = vpack.c.bf16 %v31, %v30
  %v62 = vpack.c.bf16 %v33, %v32
  %v63 = vpack.c.bf16 %v35, %v34
  %v64 = vpack.c.bf16 %v37, %v36
  %v65 = vpack.c.bf16 %v39, %v38
  %v66 = vpack.c.bf16 %v41, %v40
  %v67 = vpack.c.bf16 %v43, %v42
  %v68 = vpack.c.bf16 %v45, %v44
  %v69 = vpack.c.bf16 %v47, %v46
  %v70 = vpack.c.bf16 %v49, %v48
  %v71 = vpack.c.bf16 %v51, %v50
  %v72 = vpack.c.bf16 %v53, %v52
  %v73 = vpack.c.bf16 %v55, %v54
  %v74 = vpack.c.bf16 %v57, %v56
  %v75 = vpack.c.bf16 %v59, %v58
  %v76 = vld [vmem:[%s1] sm:$0xf]
  %v77 = vld [vmem:[%s1 + $0x4] sm:$0xf]
  %v78 = vld [vmem:[%s1 + $0x8] sm:$0xf]
  %v79 = vld [vmem:[%s1 + $0xc] sm:$0xf]
  %v80 = vld [vmem:[%s1 + $0x10] sm:$0xf]
  %v81 = vld [vmem:[%s1 + $0x14] sm:$0xf]
  %v82 = vld [vmem:[%s1 + $0x18] sm:$0xf]
  %v83 = vld [vmem:[%s1 + $0x1c] sm:$0xf]
  %v92 = vunpack.c.l.b16 %v76
  %v93 = vunpack.c.l.b16 %v77
  %v94 = vunpack.c.l.b16 %v78
  %v95 = vunpack.c.l.b16 %v79
  %v96 = vunpack.c.l.b16 %v80
  %v97 = vunpack.c.l.b16 %v81
  %v98 = vunpack.c.l.b16 %v82
  %v99 = vunpack.c.l.b16 %v83
  %v100 = vpack.c.b16 %v93, %v92
  %v101 = vpack.c.b16 %v95, %v94
  %v102 = vpack.c.b16 %v97, %v96
  %v103 = vpack.c.b16 %v99, %v98
  %vm104 = vcmask 261120
  %v106 = vsel %vm104, %v100, 0
  %v109 = vsel %vm104, %v101, 0
  %v112 = vsel %vm104, %v102, 0
  %v115 = vsel %vm104, %v103, 0
  %v118 = vsel %vm104, %v60, 0
  %v121 = vsel %vm104, %v61, 0
  %v124 = vsel %vm104, %v62, 0
  %v127 = vsel %vm104, %v63, 0
  %v130 = vsel %vm104, %v64, 0
  %v133 = vsel %vm104, %v65, 0
  %v136 = vsel %vm104, %v66, 0
  %v139 = vsel %vm104, %v67, 0
  %v142 = vsel %vm104, %v68, 0
  %v145 = vsel %vm104, %v69, 0
  %v148 = vsel %vm104, %v70, 0
  %v151 = vsel %vm104, %v71, 0
  %v154 = vsel %vm104, %v72, 0
  %v157 = vsel %vm104, %v73, 0
  %v160 = vsel %vm104, %v74, 0
  %v163 = vsel %vm104, %v75, 0
  %165 = vmatpush.bf16.xpose.msra.mxu0 %v139
  %166 = vmatpush.bf16.xpose.msra.mxu0 %v136
  %167 = vmatpush.bf16.xpose.msra.mxu0 %v133
  %168 = vmatpush.bf16.xpose.msra.mxu0 %v130
  %169 = vmatpush.bf16.xpose.msra.mxu0 %v127
  %170 = vmatpush.bf16.xpose.msra.mxu0 %v124
  %171 = vmatpush.bf16.xpose.msra.mxu0 %v121
  %172 = vmatpush.bf16.xpose.msra.mxu0 %v118
  %173 = vmatmul.bf16.gmra.mxu0 %v106
  %v174 = vpop.f32.mrf.mxu0
  %v175 = vadd.f32 0.0, %v174
  %v176 = vpop.f32.mrf.mxu0
  %v177 = vadd.f32 0.0, %v176
  %178 = vmatmul.bf16.gmra.mxu0 %v109
  %v179 = vpop.f32.mrf.mxu0
  %v180 = vadd.f32 0.0, %v179
  %v181 = vpop.f32.mrf.mxu0
  %v182 = vadd.f32 0.0, %v181
  %183 = vmatmul.bf16.gmra.mxu0 %v112
  %v184 = vpop.f32.mrf.mxu0
  %v185 = vadd.f32 0.0, %v184
  %v186 = vpop.f32.mrf.mxu0
  %v187 = vadd.f32 0.0, %v186
  %188 = vmatmul.bf16.gmra.mxu0 %v115
  %v189 = vpop.f32.mrf.mxu0
  %v190 = vadd.f32 0.0, %v189
  %v191 = vpop.f32.mrf.mxu0
  %v192 = vadd.f32 0.0, %v191
  %193 = vdwg.mxu0
  %194 = vmatpush.bf16.xpose.msra.mxu0 %v163
  %195 = vmatpush.bf16.xpose.msra.mxu0 %v160
  %196 = vmatpush.bf16.xpose.msra.mxu0 %v157
  %197 = vmatpush.bf16.xpose.msra.mxu0 %v154
  %198 = vmatpush.bf16.xpose.msra.mxu0 %v151
  %199 = vmatpush.bf16.xpose.msra.mxu0 %v148
  %200 = vmatpush.bf16.xpose.msra.mxu0 %v145
  %201 = vmatpush.bf16.xpose.msra.mxu0 %v142
  %202 = vmatmul.bf16.gmra.mxu0 %v106
  %v203 = vpop.f32.mrf.mxu0
  %v204 = vadd.f32 0.0, %v203
  %v205 = vpop.f32.mrf.mxu0
  %v206 = vadd.f32 0.0, %v205
  %207 = vmatmul.bf16.gmra.mxu0 %v109
  %v208 = vpop.f32.mrf.mxu0
  %v209 = vadd.f32 0.0, %v208
  %v210 = vpop.f32.mrf.mxu0
  %v211 = vadd.f32 0.0, %v210
  %212 = vmatmul.bf16.gmra.mxu0 %v112
  %v213 = vpop.f32.mrf.mxu0
  %v214 = vadd.f32 0.0, %v213
  %v215 = vpop.f32.mrf.mxu0
  %v216 = vadd.f32 0.0, %v215
  %217 = vmatmul.bf16.gmra.mxu0 %v115
  %v218 = vpop.f32.mrf.mxu0
  %v219 = vadd.f32 0.0, %v218
  %v220 = vpop.f32.mrf.mxu0
  %v221 = vadd.f32 0.0, %v220
  %222 = vdwg.mxu0
  %v223 = vpack.c.bf16 %v204, %v175
  %v224 = vpack.c.bf16 %v206, %v177
  %v225 = vpack.c.bf16 %v209, %v180
  %v226 = vpack.c.bf16 %v211, %v182
  %v227 = vpack.c.bf16 %v214, %v185
  %v228 = vpack.c.bf16 %v216, %v187
  %v229 = vpack.c.bf16 %v219, %v190
  %v230 = vpack.c.bf16 %v221, %v192
  %v231 = vld [vmem:[%s2] sm:$0xf]
  %v232 = vld [vmem:[%s2 + $0x4] sm:$0xf]
  %v233 = vld [vmem:[%s2 + $0x8] sm:$0xf]
  %v234 = vld [vmem:[%s2 + $0xc] sm:$0xf]
  %v235 = vld [vmem:[%s2 + $0x10] sm:$0xf]
  %v236 = vld [vmem:[%s2 + $0x14] sm:$0xf]
  %v237 = vld [vmem:[%s2 + $0x18] sm:$0xf]
  %v238 = vld [vmem:[%s2 + $0x1c] sm:$0xf]
  %240 = vset.pattern.permute.xlu0 0
  %241 = vperm.xlu0 %240, %v231
  %v242 = vpop.permute.xlu0 %241
  %v245 = vunpack.c.l.s4 839922192
  %v246 = vunpack.c.0.s8 %v245
  %v247 = vperm.slane %v242, %v246
  %249 = vset.pattern.permute.xlu0 0
  %250 = vperm.xlu0 %249, %v232
  %v251 = vpop.permute.xlu0 %250
  %v254 = vunpack.c.l.s4 839922192
  %v255 = vunpack.c.0.s8 %v254
  %v256 = vperm.slane %v251, %v255
  %258 = vset.pattern.permute.xlu0 0
  %259 = vperm.xlu0 %258, %v233
  %v260 = vpop.permute.xlu0 %259
  %v263 = vunpack.c.l.s4 839922192
  %v264 = vunpack.c.0.s8 %v263
  %v265 = vperm.slane %v260, %v264
  %267 = vset.pattern.permute.xlu0 0
  %268 = vperm.xlu0 %267, %v234
  %v269 = vpop.permute.xlu0 %268
  %v272 = vunpack.c.l.s4 839922192
  %v273 = vunpack.c.0.s8 %v272
  %v274 = vperm.slane %v269, %v273
  %276 = vset.pattern.permute.xlu0 0
  %277 = vperm.xlu0 %276, %v235
  %v278 = vpop.permute.xlu0 %277
  %v281 = vunpack.c.l.s4 839922192
  %v282 = vunpack.c.0.s8 %v281
  %v283 = vperm.slane %v278, %v282
  %285 = vset.pattern.permute.xlu0 0
  %286 = vperm.xlu0 %285, %v236
  %v287 = vpop.permute.xlu0 %286
  %v290 = vunpack.c.l.s4 839922192
  %v291 = vunpack.c.0.s8 %v290
  %v292 = vperm.slane %v287, %v291
  %294 = vset.pattern.permute.xlu0 0
  %295 = vperm.xlu0 %294, %v237
  %v296 = vpop.permute.xlu0 %295
  %v299 = vunpack.c.l.s4 839922192
  %v300 = vunpack.c.0.s8 %v299
  %v301 = vperm.slane %v296, %v300
  %303 = vset.pattern.permute.xlu0 0
  %304 = vperm.xlu0 %303, %v238
  %v305 = vpop.permute.xlu0 %304
  %v308 = vunpack.c.l.s4 839922192
  %v309 = vunpack.c.0.s8 %v308
  %v310 = vperm.slane %v305, %v309
  %v311 = vunpack.c.l.bf16 %v223
  %v312 = vunpack.c.h.bf16 %v223
  %v313 = vunpack.c.l.bf16 %v224
  %v314 = vunpack.c.h.bf16 %v224
  %v315 = vunpack.c.l.bf16 %v225
  %v316 = vunpack.c.h.bf16 %v225
  %v317 = vunpack.c.l.bf16 %v226
  %v318 = vunpack.c.h.bf16 %v226
  %v319 = vunpack.c.l.bf16 %v227
  %v320 = vunpack.c.h.bf16 %v227
  %v321 = vunpack.c.l.bf16 %v228
  %v322 = vunpack.c.h.bf16 %v228
  %v323 = vunpack.c.l.bf16 %v229
  %v324 = vunpack.c.h.bf16 %v229
  %v325 = vunpack.c.l.bf16 %v230
  %v326 = vunpack.c.h.bf16 %v230
  %v327 = vunpack.c.l.bf16 %v247
  %v328 = vunpack.c.l.bf16 %v256
  %v329 = vunpack.c.l.bf16 %v265
  %v330 = vunpack.c.l.bf16 %v274
  %v331 = vunpack.c.l.bf16 %v283
  %v332 = vunpack.c.l.bf16 %v292
  %v333 = vunpack.c.l.bf16 %v301
  %v334 = vunpack.c.l.bf16 %v310
  %v335 = vadd.f32 %v311, %v327
  %v336 = vadd.f32 %v312, %v327
  %v337 = vadd.f32 %v313, %v328
  %v338 = vadd.f32 %v314, %v328
  %v339 = vadd.f32 %v315, %v329
  %v340 = vadd.f32 %v316, %v329
  %v341 = vadd.f32 %v317, %v330
  %v342 = vadd.f32 %v318, %v330
  %v343 = vadd.f32 %v319, %v331
  %v344 = vadd.f32 %v320, %v331
  %v345 = vadd.f32 %v321, %v332
  %v346 = vadd.f32 %v322, %v332
  %v347 = vadd.f32 %v323, %v333
  %v348 = vadd.f32 %v324, %v333
  %v349 = vadd.f32 %v325, %v334
  %v350 = vadd.f32 %v326, %v334
  %v351 = vpack.c.bf16 %v336, %v335
  %v352 = vpack.c.bf16 %v338, %v337
  %v353 = vpack.c.bf16 %v340, %v339
  %v354 = vpack.c.bf16 %v342, %v341
  %v355 = vpack.c.bf16 %v344, %v343
  %v356 = vpack.c.bf16 %v346, %v345
  %v357 = vpack.c.bf16 %v348, %v347
  %v358 = vpack.c.bf16 %v350, %v349
  %v359 = vunpack.c.l.bf16 %v351
  %v360 = vunpack.c.h.bf16 %v351
  %v361 = vunpack.c.l.bf16 %v352
  %v362 = vunpack.c.h.bf16 %v352
  %v363 = vunpack.c.l.bf16 %v353
  %v364 = vunpack.c.h.bf16 %v353
  %v365 = vunpack.c.l.bf16 %v354
  %v366 = vunpack.c.h.bf16 %v354
  %v367 = vunpack.c.l.bf16 %v355
  %v368 = vunpack.c.h.bf16 %v355
  %v369 = vunpack.c.l.bf16 %v356
  %v370 = vunpack.c.h.bf16 %v356
  %v371 = vunpack.c.l.bf16 %v357
  %v372 = vunpack.c.h.bf16 %v357
  %v373 = vunpack.c.l.bf16 %v358
  %v374 = vunpack.c.h.bf16 %v358
  %vm375 = vcmp.gt.f32.partialorder %v359, 0.0
  %vm376 = vcmp.gt.f32.partialorder %v360, 0.0
  %vm377 = vcmp.gt.f32.partialorder %v361, 0.0
  %vm378 = vcmp.gt.f32.partialorder %v362, 0.0
  %vm379 = vcmp.gt.f32.partialorder %v363, 0.0
  %vm380 = vcmp.gt.f32.partialorder %v364, 0.0
  %vm381 = vcmp.gt.f32.partialorder %v365, 0.0
  %vm382 = vcmp.gt.f32.partialorder %v366, 0.0
  %vm383 = vcmp.gt.f32.partialorder %v367, 0.0
  %vm384 = vcmp.gt.f32.partialorder %v368, 0.0
  %vm385 = vcmp.gt.f32.partialorder %v369, 0.0
  %vm386 = vcmp.gt.f32.partialorder %v370, 0.0
  %vm387 = vcmp.gt.f32.partialorder %v371, 0.0
  %vm388 = vcmp.gt.f32.partialorder %v372, 0.0
  %vm389 = vcmp.gt.f32.partialorder %v373, 0.0
  %vm390 = vcmp.gt.f32.partialorder %v374, 0.0
  %v391 = vmul.f32 %v359, 0.010009766
  %v392 = vmul.f32 %v360, 0.010009766
  %v393 = vmul.f32 %v361, 0.010009766
  %v394 = vmul.f32 %v362, 0.010009766
  %v395 = vmul.f32 %v363, 0.010009766
  %v396 = vmul.f32 %v364, 0.010009766
  %v397 = vmul.f32 %v365, 0.010009766
  %v398 = vmul.f32 %v366, 0.010009766
  %v399 = vmul.f32 %v367, 0.010009766
  %v400 = vmul.f32 %v368, 0.010009766
  %v401 = vmul.f32 %v369, 0.010009766
  %v402 = vmul.f32 %v370, 0.010009766
  %v403 = vmul.f32 %v371, 0.010009766
  %v404 = vmul.f32 %v372, 0.010009766
  %v405 = vmul.f32 %v373, 0.010009766
  %v406 = vmul.f32 %v374, 0.010009766
  %v407 = vpack.c.bf16 %v392, %v391
  %v408 = vpack.c.bf16 %v394, %v393
  %v409 = vpack.c.bf16 %v396, %v395
  %v410 = vpack.c.bf16 %v398, %v397
  %v411 = vpack.c.bf16 %v400, %v399
  %v412 = vpack.c.bf16 %v402, %v401
  %v413 = vpack.c.bf16 %v404, %v403
  %v414 = vpack.c.bf16 %v406, %v405
  %vm415 = vmpackc.low %vm376, %vm375
  %vm416 = vmpackc.low %vm378, %vm377
  %vm417 = vmpackc.low %vm380, %vm379
  %vm418 = vmpackc.low %vm382, %vm381
  %vm419 = vmpackc.low %vm384, %vm383
  %vm420 = vmpackc.low %vm386, %vm385
  %vm421 = vmpackc.low %vm388, %vm387
  %vm422 = vmpackc.low %vm390, %vm389
  %v423 = vsel %vm415, %v351, %v407
  %v424 = vsel %vm416, %v352, %v408
  %v425 = vsel %vm417, %v353, %v409
  %v426 = vsel %vm418, %v354, %v410
  %v427 = vsel %vm419, %v355, %v411
  %v428 = vsel %vm420, %v356, %v412
  %v429 = vsel %vm421, %v357, %v413
  %v430 = vsel %vm422, %v358, %v414
  %v431 = vld [vmem:[%s3] sm:$0xf]
  %v432 = vld [vmem:[%s3 + $0x4] sm:$0xf]
  %v433 = vld [vmem:[%s3 + $0x8] sm:$0xf]
  %v434 = vld [vmem:[%s3 + $0xc] sm:$0xf]
  %v435 = vld [vmem:[%s4] sm:$0xff]
  %v436 = vld [vmem:[%s4 + $0x8] sm:$0xff]
  %v437 = vld [vmem:[%s4 + $0x10] sm:$0xff]
  %v438 = vld [vmem:[%s4 + $0x18] sm:$0xff]
  %440 = vset.pattern.permute.xlu0 0
  %441 = vperm.xlu0 %440, %v435
  %v442 = vpop.permute.xlu0 %441
  %445 = vset.pattern.permute.xlu0 0
  %446 = vperm.xlu0 %445, %v436
  %v447 = vpop.permute.xlu0 %446
  %450 = vset.pattern.permute.xlu0 0
  %451 = vperm.xlu0 %450, %v437
  %v452 = vpop.permute.xlu0 %451
  %455 = vset.pattern.permute.xlu0 0
  %456 = vperm.xlu0 %455, %v438
  %v457 = vpop.permute.xlu0 %456
  %v463 = vunpack.c.l.b16 %v431
  %v464 = vunpack.c.l.b16 %v432
  %v465 = vunpack.c.l.b16 %v433
  %v466 = vunpack.c.l.b16 %v434
  %v467 = vpack.c.b16 %v464, %v463
  %v468 = vpack.c.b16 %v466, %v465
  %v477 = vunpack.c.l.b16 %v423
  %v478 = vunpack.c.h.b16 %v423
  %v479 = vunpack.c.l.b16 %v424
  %v480 = vunpack.c.h.b16 %v424
  %v481 = vunpack.c.l.b16 %v425
  %v482 = vunpack.c.h.b16 %v425
  %v483 = vunpack.c.l.b16 %v426
  %v484 = vunpack.c.h.b16 %v426
  %v485 = vunpack.c.l.b16 %v427
  %v486 = vunpack.c.h.b16 %v427
  %v487 = vunpack.c.l.b16 %v428
  %v488 = vunpack.c.h.b16 %v428
  %v489 = vunpack.c.l.b16 %v429
  %v490 = vunpack.c.h.b16 %v429
  %v491 = vunpack.c.l.b16 %v430
  %v492 = vunpack.c.h.b16 %v430
  %v493 = vpack.c.b16 %v479, %v477
  %v494 = vpack.c.b16 %v480, %v478
  %v495 = vpack.c.b16 %v483, %v481
  %v496 = vpack.c.b16 %v484, %v482
  %v497 = vpack.c.b16 %v487, %v485
  %v498 = vpack.c.b16 %v488, %v486
  %v499 = vpack.c.b16 %v491, %v489
  %v500 = vpack.c.b16 %v492, %v490
  %vm509 = vcmask 523264
  %v511 = vsel %vm509, %v467, 0
  %v514 = vsel %vm509, %v468, 0
  %516 = vmatpush.bf16.msra.mxu0 0
  %517 = vmatpush.bf16.msra.mxu0 0
  %518 = vmatpush.bf16.msra.mxu0 0
  %519 = vmatpush.bf16.msra.mxu0 0
  %520 = vmatpush.bf16.msra.mxu0 %v499
  %521 = vmatpush.bf16.msra.mxu0 %v497
  %522 = vmatpush.bf16.msra.mxu0 %v495
  %523 = vmatpush.bf16.msra.mxu0 %v493
  %524 = vmatmul.bf16.gmra.mxu0 %v511
  %v525 = vpop.f32.mrf.mxu0
  %v526 = vadd.f32 %v442, %v525
  %v527 = vpop.f32.mrf.mxu0
  %v528 = vadd.f32 %v447, %v527
  %529 = vmatmul.bf16.gmra.mxu0 %v514
  %v530 = vpop.f32.mrf.mxu0
  %v531 = vadd.f32 %v452, %v530
  %v532 = vpop.f32.mrf.mxu0
  %v533 = vadd.f32 %v457, %v532
  %534 = vdwg.mxu0
  %535 = vmatpush.bf16.msra.mxu0 0
  %536 = vmatpush.bf16.msra.mxu0 0
  %537 = vmatpush.bf16.msra.mxu0 0
  %538 = vmatpush.bf16.msra.mxu0 0
  %539 = vmatpush.bf16.msra.mxu0 %v500
  %540 = vmatpush.bf16.msra.mxu0 %v498
  %541 = vmatpush.bf16.msra.mxu0 %v496
  %542 = vmatpush.bf16.msra.mxu0 %v494
  %543 = vmatmul.bf16.gmra.mxu0 %v511
  %v544 = vpop.f32.mrf.mxu0
  %v545 = vadd.f32 %v442, %v544
  %v546 = vpop.f32.mrf.mxu0
  %v547 = vadd.f32 %v447, %v546
  %548 = vmatmul.bf16.gmra.mxu0 %v514
  %v549 = vpop.f32.mrf.mxu0
  %v550 = vadd.f32 %v452, %v549
  %v551 = vpop.f32.mrf.mxu0
  %v552 = vadd.f32 %v457, %v551
  %553 = vdwg.mxu0
  %vm554 = vcmp.gt.f32.partialorder %v526, 0.0
  %vm555 = vcmp.gt.f32.partialorder %v545, 0.0
  %vm556 = vcmp.gt.f32.partialorder %v528, 0.0
  %vm557 = vcmp.gt.f32.partialorder %v547, 0.0
  %vm558 = vcmp.gt.f32.partialorder %v531, 0.0
  %vm559 = vcmp.gt.f32.partialorder %v550, 0.0
  %vm560 = vcmp.gt.f32.partialorder %v533, 0.0
  %vm561 = vcmp.gt.f32.partialorder %v552, 0.0
  %v562 = vmul.f32 %v526, 0.01
  %v563 = vmul.f32 %v545, 0.01
  %v564 = vmul.f32 %v528, 0.01
  %v565 = vmul.f32 %v547, 0.01
  %v566 = vmul.f32 %v531, 0.01
  %v567 = vmul.f32 %v550, 0.01
  %v568 = vmul.f32 %v533, 0.01
  %v569 = vmul.f32 %v552, 0.01
  %v570 = vsel %vm554, %v526, %v562
  %v571 = vsel %vm555, %v545, %v563
  %v572 = vsel %vm556, %v528, %v564
  %v573 = vsel %vm557, %v547, %v565
  %v574 = vsel %vm558, %v531, %v566
  %v575 = vsel %vm559, %v550, %v567
  %v576 = vsel %vm560, %v533, %v568
  %v577 = vsel %vm561, %v552, %v569
  %v578 = vld [vmem:[%s5] sm:$0xff]
  %v579 = vld [vmem:[%s5 + $0x8] sm:$0xff]
  %v580 = vld [vmem:[%s5 + $0x10] sm:$0xff]
  %v581 = vld [vmem:[%s5 + $0x18] sm:$0xff]
  %583 = vset.pattern.permute.xlu0 0
  %584 = vperm.xlu0 %583, %v578
  %v585 = vpop.permute.xlu0 %584
  %588 = vset.pattern.permute.xlu0 0
  %589 = vperm.xlu0 %588, %v579
  %v590 = vpop.permute.xlu0 %589
  %593 = vset.pattern.permute.xlu0 0
  %594 = vperm.xlu0 %593, %v580
  %v595 = vpop.permute.xlu0 %594
  %598 = vset.pattern.permute.xlu0 0
  %599 = vperm.xlu0 %598, %v581
  %v600 = vpop.permute.xlu0 %599
  %v602 = vmul.f32 %v570, %v585
  %v603 = vmul.f32 %v571, %v585
  %v604 = vmul.f32 %v572, %v590
  %v605 = vmul.f32 %v573, %v590
  %v606 = vmul.f32 %v574, %v595
  %v607 = vmul.f32 %v575, %v595
  %v608 = vmul.f32 %v576, %v600
  %v609 = vmul.f32 %v577, %v600
  %v610 = vadd.f32 %v602, %v604
  %v611 = vadd.f32 %v610, %v606
  %v612 = vadd.f32 %v611, %v608
  %v613 = vrot.slane %v612, 4
  %v614 = vadd.f32 %v612, %v613
  %v615 = vrot.slane %v614, 2
  %v616 = vadd.f32 %v614, %v615
  %v617 = vrot.slane %v616, 1
  %v618 = vadd.f32 %v616, %v617
  %v619 = vadd.f32 %v603, %v605
  %v620 = vadd.f32 %v619, %v607
  %v621 = vadd.f32 %v620, %v609
  %v622 = vrot.slane %v621, 4
  %v623 = vadd.f32 %v621, %v622
  %v624 = vrot.slane %v623, 2
  %v625 = vadd.f32 %v623, %v624
  %v626 = vrot.slane %v625, 1
  %v627 = vadd.f32 %v625, %v626
  %s628 = sld [smem:[#allocation2]]
  %v629 = vstv %s628
  %v630 = vadd.f32 %v618, %v629
  %v631 = vadd.f32 %v627, %v629
  %v634 = vrot.slane %v631, 7
  %vm635 = vcmask 1040384
  %v636 = vsel %vm635, %v630, %v634
  %v638 = vlaneseq
  %vm639 = vcmp.ge.s32.totalorder %v638, 0
  %vm640 = vcmp.lt.s32.totalorder %v638, 256
  %vm641 = vmand %vm639, %vm640
  %642 = vst.msk [vmem:[%s7] sm:$0x3] %vm641, %v636
  // Predicated region
  $region30: #{neural_network_forward.1} parent=0 // pred_check
    _
  $region31: #{neural_network_forward.1} parent=0 // pred_check_branch
    %644 = sbr.rel (0) target = $region33
  $region32: #{neural_network_forward.1} parent=0 // pred_region
    _
  $region33: #{neural_network_forward.1} parent=0 // pred_fallthru
    _
  // Predicated region
  $region34: #{neural_network_forward.1} parent=0 // pred_check
    _
  $region35: #{neural_network_forward.1} parent=0 // pred_check_branch
    %646 = sbr.rel (0) target = $region37
  $region36: #{neural_network_forward.1} parent=0 // pred_region
    _
  $region37: #{neural_network_forward.1} parent=0 // pred_fallthru
    _

</llo_original>
